<compile_context>
chip_gen: v7x
topology: tpu7x:2x2x1
jax: 0.10.0
libtpu: 0.0.40
codegen_flags: <defaults>
</compile_context>

<pallas_src>
import functools

import jax
import jax.numpy as jnp
from jax.experimental import pallas as pl
from jax.experimental.pallas import tpu as pltpu


def _lovasz_kernel(gts_ref, tri_ref, err_ref, fg_ref, out_ref,
                   carry_ref, acc_ref, *, blocks_per_step, num_classes, tile_n):
  """One grid step = `blocks_per_step` point tiles of `tile_n` points, all classes.

  err_ref/fg_ref: (blocks_per_step*num_classes, tile_n) f32, row = b*num_classes + c,
      per-class errors sorted descending and the matching 0/1 fg indicator.
  gts_ref: (num_classes, 1) f32 total per-class foreground counts (whole cloud).
  tri_ref: (tile_n, tile_n) bf16 inclusive triangular mask tri[j, i] = (j <= i).
  carry_ref/acc_ref: (num_classes, 1) f32 running fg-cumsum carry / loss accumulator.
  """
  s = pl.program_id(0)

  @pl.when(s == 0)
  def _():
    carry_ref[...] = jnp.zeros_like(carry_ref)
    acc_ref[...] = jnp.zeros_like(acc_ref)

  fg = fg_ref[...]        # (B*Cp, T) f32, values exactly {0,1}
  err = err_ref[...]      # (B*Cp, T) f32
  gts = gts_ref[...]      # (Cp, 1)  f32

  # Single bf16 MXU matmul: inclusive within-tile cumsum of fg along the point
  # (lane) axis. 0/1 values are exact in bf16; accumulation stays f32 (exact for
  # counts < 2^24). All other cumsums are derived below without extra matmuls.
  cum_local = jnp.dot(fg.astype(jnp.bfloat16), tri_ref[...],
                      preferred_element_type=jnp.float32)        # (B*Cp, T)

  # Lane position within a tile (0..T-1), hoisted out of the sub-block loop.
  col = jax.lax.broadcasted_iota(jnp.int32, (num_classes, tile_n), 1)
  col = col.astype(jnp.float32)

  carry = carry_ref[...]  # (Cp, 1) global fg cumsum up to (excluding) this tile
  acc = acc_ref[...]      # (Cp, 1)

  for b in range(blocks_per_step):                 # static, fully unrolled
    r0 = b * num_classes                           # sublane-aligned (multiple of 8)
    fg_b = fg[r0:r0 + num_classes, :]
    err_b = err[r0:r0 + num_classes, :]

    cum_fg = cum_local[r0:r0 + num_classes, :] + carry   # inclusive global cumsum
    cum_fg_s = cum_fg - fg_b                             # strict (exclusive)

    # Global 0-based point position of each lane; since fg + bg == 1 everywhere
    # (including trailing point padding), background cumsums follow for free.
    base = ((s * blocks_per_step + b) * tile_n).astype(jnp.float32)
    pos = col + base
    cum_bg = (pos + 1.0) - cum_fg                        # inclusive bg cumsum
    cum_bg_s = pos - cum_fg_s                            # strict bg cumsum

    inter = gts - cum_fg                                 # intersection after p
    union = gts + cum_bg                                 # union after p (>=1 real data)
    union_s = gts + cum_bg_s                             # union before p (0 only at p==0)

    # lovasz_grad folded to one division per element:
    #   grad = inter_s/union_s - inter/union
    #        = (fg*union_s + (1-fg)*inter) / (union_s*union)     (since fg*(1-fg)=0)
    numer = jnp.where(fg_b > 0.5, union_s, inter)
    denom = jnp.maximum(union_s * union, 1e-12)  # guards p==0 of absent/padded classes
    grad = numer / denom

    acc = acc + jnp.sum(err_b * grad, axis=1, keepdims=True)
    carry = cum_fg[:, tile_n - 1:tile_n]                 # new running carry

  carry_ref[...] = carry
  acc_ref[...] = acc

  @pl.when(s == pl.num_programs(0) - 1)
  def _():
    # classes='present': average only over classes that occur in the target.
    present = (gts > 0.0).astype(jnp.float32)            # (Cp, 1)
    total = jnp.sum(acc * present)
    count = jnp.sum(present)
    loss = jnp.where(count > 0.0, total / jnp.maximum(count, 1.0), 0.0)
    out_ref[...] = loss.reshape(1, 1).astype(jnp.float32)


def lovasz_softmax_pallas(probas, labels, classes='present', per_image=False,
                          tile_n=128, blocks_per_step=4):
  """Lovasz-softmax loss. probas: (N, C) probabilities, labels: (N,) int."""
  assert not per_image, "per_image=True not supported (module default is False)"
  assert classes == 'present', "only classes='present' (module default) supported"
  n, c = probas.shape
  probas = probas.astype(jnp.float32)

  # ---- XLA glue: one-hot fg, per-class errors, ONE multi-operand descending
  # sort carrying fg as payload (no argsort + two gathers). ----
  cls_ids = jnp.arange(c, dtype=labels.dtype)
  fg = (labels[None, :] == cls_ids[:, None]).astype(jnp.float32)   # (C, N)
  errors = jnp.abs(fg - probas.T)                                  # (C, N)
  neg_sorted, fg_sorted = jax.lax.sort((-errors, fg), dimension=1, num_keys=1)
  errors_sorted = -neg_sorted
  gts = jnp.sum(fg, axis=1, keepdims=True)                         # (C, 1)

  # Pad classes to a sublane multiple and points to a grid-step multiple.
  # Trailing padded points (fg=0, err=0) cannot change grads at real positions
  # and contribute exactly 0 to every per-class dot product; padded classes have
  # gts == 0 so they are masked out of the present-class mean.
  cp = -(-c // 8) * 8
  step = tile_n * blocks_per_step
  n_pad = -(-n // step) * step
  errors_sorted = jnp.pad(errors_sorted, ((0, cp - c), (0, n_pad - n)))
  fg_sorted = jnp.pad(fg_sorted, ((0, cp - c), (0, n_pad - n)))
  gts = jnp.pad(gts, ((0, cp - c), (0, 0)))

  # (Cp, K, T) -> (K, Cp, T) -> (K*Cp, T): row = point_tile*Cp + class. Each grid
  # step's (B*Cp, T) block holds B consecutive point tiles for all classes and
  # feeds one (B*Cp, T) x (T, T) MXU matmul.
  k = n_pad // tile_n

  def to_rows(x):
    return x.reshape(cp, k, tile_n).transpose(1, 0, 2).reshape(k * cp, tile_n)

  err_rows = to_rows(errors_sorted)
  fg_rows = to_rows(fg_sorted)

  # Small (T, T) triangular mask, built once in HBM and kept resident in VMEM.
  idx = jnp.arange(tile_n, dtype=jnp.int32)
  tri = (idx[:, None] <= idx[None, :]).astype(jnp.bfloat16)

  rows_per_step = blocks_per_step * cp
  kernel = functools.partial(_lovasz_kernel, blocks_per_step=blocks_per_step,
                             num_classes=cp, tile_n=tile_n)
  out = pl.pallas_call(
      kernel,
      out_shape=jax.ShapeDtypeStruct((1, 1), jnp.float32),
      grid=(k // blocks_per_step,),
      in_specs=[
          pl.BlockSpec((cp, 1), lambda s: (0, 0)),                 # gts (resident)
          pl.BlockSpec((tile_n, tile_n), lambda s: (0, 0)),        # tri mask (resident)
          pl.BlockSpec((rows_per_step, tile_n), lambda s: (s, 0)),  # errors
          pl.BlockSpec((rows_per_step, tile_n), lambda s: (s, 0)),  # fg
      ],
      out_specs=pl.BlockSpec((1, 1), lambda s: (0, 0)),
      scratch_shapes=[pltpu.VMEM((cp, 1), jnp.float32),            # carry
                      pltpu.VMEM((cp, 1), jnp.float32)],           # per-class acc
      compiler_params=pltpu.CompilerParams(
          dimension_semantics=("arbitrary",),                      # sequential carry
          vmem_limit_bytes=32 * 1024 * 1024),
  )(gts, tri, err_rows, fg_rows)
  return out[0, 0]


class Lovasz3D:
  """JAX/Pallas port of mmdet3d Lovasz3D (forward only)."""

  def __init__(self, loss_function, reduction='mean', loss_weight=1.0,
               per_image=False, classes='present'):
    self.loss_function = loss_function
    self.reduction = reduction
    self.loss_weight = loss_weight
    self.per_image = per_image
    self.classes = classes

  def __call__(self, pred, target, weight=None, avg_factor=None,
               reduction_override=None, **kwargs):
    if weight is not None and (not bool(jnp.any(weight > 0))):
      return pred.sum() * weight.sum()
    assert reduction_override in (None, 'none', 'mean', 'sum')
    if weight is not None and weight.ndim > 1:
      weight = weight.mean(-1)
    loss = self.loss_weight * self.loss_function(
        pred, target, self.classes, self.per_image)
    return loss


def _lovasz_reference(probas, labels, classes='present'):
  """Pure-JAX reference (mirrors the original torch implementation)."""
  n, c = probas.shape
  fg = (labels[None, :] == jnp.arange(c)[:, None]).astype(jnp.float32)
  errors = jnp.abs(fg - probas.T)
  order = jnp.argsort(-errors, axis=1)
  errors_sorted = jnp.take_along_axis(errors, order, axis=1)
  fg_sorted = jnp.take_along_axis(fg, order, axis=1)
  gts = fg_sorted.sum(axis=1, keepdims=True)
  intersection = gts - jnp.cumsum(fg_sorted, axis=1)
  union = gts + jnp.cumsum(1.0 - fg_sorted, axis=1)
  jac = 1.0 - intersection / union
  grad = jnp.concatenate([jac[:, :1], jac[:, 1:] - jac[:, :-1]], axis=1)
  per_class = jnp.sum(errors_sorted * grad, axis=1)
  present = (gts[:, 0] > 0).astype(jnp.float32)
  den = jnp.sum(present)
  return jnp.where(den > 0, jnp.sum(per_class * present) / jnp.maximum(den, 1.0), 0.0)


if __name__ == "__main__":
  key = jax.random.PRNGKey(0)
  n_points, n_classes = 1024, 4
  k1, k2 = jax.random.split(key)
  logits = jax.random.normal(k1, (n_points, n_classes), dtype=jnp.float32)
  pred = jax.nn.softmax(logits, axis=-1)     # lovasz_softmax expects probabilities
  target = jax.random.randint(k2, (n_points,), 0, n_classes, dtype=jnp.int32)

  module = Lovasz3D(loss_function=lovasz_softmax_pallas, reduction='mean',
                    loss_weight=1.0, per_image=False, classes='present')
  loss = module(pred, target)
  jax.block_until_ready(loss)

  ref = _lovasz_reference(pred, target)
  assert jnp.allclose(loss, ref, atol=1e-4, rtol=1e-4), (float(loss), float(ref))
  print("KERNEL_OK")
</pallas_src>

<mosaic_0001>
module attributes {stable_mosaic.version = 11 : i64} {
  func.func @_lovasz_kernel(%arg0: i32, %arg1: memref<8x1xf32, #tpu.memory_space<vmem>>, %arg2: memref<128x128xbf16, #tpu.memory_space<vmem>>, %arg3: memref<32x128xf32, #tpu.memory_space<vmem>>, %arg4: memref<32x128xf32, #tpu.memory_space<vmem>>, %arg5: memref<1x1xf32, #tpu.memory_space<vmem>>, %arg6: memref<8x1xf32, #tpu.memory_space<vmem>>, %arg7: memref<8x1xf32, #tpu.memory_space<vmem>>) attributes {dimension_semantics = [#tpu.dimension_semantics<arbitrary>], iteration_bounds = array<i64: 2>, scalar_prefetch = 0 : i64, scratch_operands = 2 : i64, tpu.core_type = #tpu.core_type<tc>, window_params = [{pipeline_mode = #tpu.pipeline_mode<synchronous>, transform_indices = @transform_0, window_bounds = array<i64: 8, 1>}, {pipeline_mode = #tpu.pipeline_mode<synchronous>, transform_indices = @transform_1, window_bounds = array<i64: 128, 128>}, {transform_indices = @transform_2, window_bounds = array<i64: 32, 128>}, {transform_indices = @transform_3, window_bounds = array<i64: 32, 128>}, {pipeline_mode = #tpu.pipeline_mode<synchronous>, transform_indices = @transform_4, window_bounds = array<i64: 1, 1>}]} {
    %c0_i32 = arith.constant 0 : i32
    %0 = arith.cmpi eq, %arg0, %c0_i32 : i32
    %1 = arith.extui %0 : i1 to i32
    %c0_i32_0 = arith.constant 0 : i32
    %2 = arith.cmpi ne, %1, %c0_i32_0 : i32
    scf.if %2 {
      %cst_41 = arith.constant 0.000000e+00 : f32
      %154 = vector.broadcast %cst_41 : f32 to vector<8x1xf32>
      %c0_42 = arith.constant 0 : index
      %c0_43 = arith.constant 0 : index
      %155 = vector.load %arg6[%c0_42, %c0_43] : memref<8x1xf32, #tpu.memory_space<vmem>>, vector<8x1xf32>
      tpu.vector_store %arg6[%c0_42, %c0_43], %154 {strides = array<i32>} : memref<8x1xf32, #tpu.memory_space<vmem>>, vector<8x1xf32>,
      %cst_44 = arith.constant 0.000000e+00 : f32
      %156 = vector.broadcast %cst_44 : f32 to vector<8x1xf32>
      %c0_45 = arith.constant 0 : index
      %c0_46 = arith.constant 0 : index
      %157 = vector.load %arg7[%c0_45, %c0_46] : memref<8x1xf32, #tpu.memory_space<vmem>>, vector<8x1xf32>
      tpu.vector_store %arg7[%c0_45, %c0_46], %156 {strides = array<i32>} : memref<8x1xf32, #tpu.memory_space<vmem>>, vector<8x1xf32>,
    } else {
    }
    %c0 = arith.constant 0 : index
    %c0_1 = arith.constant 0 : index
    %3 = vector.load %arg4[%c0, %c0_1] : memref<32x128xf32, #tpu.memory_space<vmem>>, vector<32x128xf32>
    %c0_2 = arith.constant 0 : index
    %c0_3 = arith.constant 0 : index
    %4 = vector.load %arg3[%c0_2, %c0_3] : memref<32x128xf32, #tpu.memory_space<vmem>>, vector<32x128xf32>
    %c0_4 = arith.constant 0 : index
    %c0_5 = arith.constant 0 : index
    %5 = vector.load %arg1[%c0_4, %c0_5] : memref<8x1xf32, #tpu.memory_space<vmem>>, vector<8x1xf32>
    %6 = arith.truncf %3 : vector<32x128xf32> to vector<32x128xbf16>
    %c0_6 = arith.constant 0 : index
    %c0_7 = arith.constant 0 : index
    %7 = vector.load %arg2[%c0_6, %c0_7] : memref<128x128xbf16, #tpu.memory_space<vmem>>, vector<128x128xbf16>
    %cst = arith.constant dense<0.000000e+00> : vector<32x128xf32>
    %8 = tpu.matmul %6, %7, %cst {dimension_numbers = #tpu.dot_dimension_numbers<[1], [0], [0], [1], [0, 0, 1, 1], [], []>} : vector<32x128xbf16>, vector<128x128xbf16>, vector<32x128xf32> -> vector<32x128xf32>
    %9 = tpu.iota {dimensions = array<i32: 1>} : vector<8x128xi32>
    %10 = arith.sitofp %9 : vector<8x128xi32> to vector<8x128xf32>
    %c0_8 = arith.constant 0 : index
    %c0_9 = arith.constant 0 : index
    %11 = vector.load %arg6[%c0_8, %c0_9] : memref<8x1xf32, #tpu.memory_space<vmem>>, vector<8x1xf32>
    %c0_10 = arith.constant 0 : index
    %c0_11 = arith.constant 0 : index
    %12 = vector.load %arg7[%c0_10, %c0_11] : memref<8x1xf32, #tpu.memory_space<vmem>>, vector<8x1xf32>
    %13 = vector.extract_strided_slice %3 {offsets = [0, 0], sizes = [8, 128], strides = [1, 1]} : vector<32x128xf32> to vector<8x128xf32>
    %14 = vector.extract_strided_slice %4 {offsets = [0, 0], sizes = [8, 128], strides = [1, 1]} : vector<32x128xf32> to vector<8x128xf32>
    %15 = vector.extract_strided_slice %8 {offsets = [0, 0], sizes = [8, 128], strides = [1, 1]} : vector<32x128xf32> to vector<8x128xf32>
    %16 = vector.broadcast %11 : vector<8x1xf32> to vector<8x128xf32>
    %17 = arith.addf %15, %16 : vector<8x128xf32>
    %18 = arith.subf %17, %13 : vector<8x128xf32>
    %c4_i32 = arith.constant 4 : i32
    %19 = arith.muli %arg0, %c4_i32 : i32
    %c0_i32_12 = arith.constant 0 : i32
    %20 = arith.addi %19, %c0_i32_12 : i32
    %c128_i32 = arith.constant 128 : i32
    %21 = arith.muli %20, %c128_i32 : i32
    %22 = arith.sitofp %21 : i32 to f32
    %23 = vector.broadcast %22 : f32 to vector<8x128xf32>
    %24 = arith.addf %10, %23 : vector<8x128xf32>
    %cst_13 = arith.constant 1.000000e+00 : f32
    %25 = vector.broadcast %cst_13 : f32 to vector<8x128xf32>
    %26 = arith.addf %24, %25 : vector<8x128xf32>
    %27 = arith.subf %26, %17 : vector<8x128xf32>
    %28 = arith.subf %24, %18 : vector<8x128xf32>
    %29 = vector.broadcast %5 : vector<8x1xf32> to vector<8x128xf32>
    %30 = arith.subf %29, %17 : vector<8x128xf32>
    %31 = vector.broadcast %5 : vector<8x1xf32> to vector<8x128xf32>
    %32 = arith.addf %31, %27 : vector<8x128xf32>
    %33 = vector.broadcast %5 : vector<8x1xf32> to vector<8x128xf32>
    %34 = arith.addf %33, %28 : vector<8x128xf32>
    %cst_14 = arith.constant 5.000000e-01 : f32
    %35 = vector.broadcast %cst_14 : f32 to vector<8x128xf32>
    %36 = arith.cmpf ogt, %13, %35 : vector<8x128xf32>
    %37 = arith.select %36, %34, %30 : vector<8x128xi1>, vector<8x128xf32>
    %38 = arith.mulf %34, %32 : vector<8x128xf32>
    %cst_15 = arith.constant 9.99999996E-13 : f32
    %39 = vector.broadcast %cst_15 : f32 to vector<8x128xf32>
    %40 = arith.maximumf %38, %39 : vector<8x128xf32>
    %41 = arith.divf %37, %40 : vector<8x128xf32>
    %42 = arith.mulf %14, %41 : vector<8x128xf32>
    %cst_16 = arith.constant dense<0.000000e+00> : vector<8xf32>
    %43 = vector.multi_reduction <add>, %42, %cst_16 [1] : vector<8x128xf32> to vector<8xf32>
    %44 = vector.shape_cast %43 : vector<8xf32> to vector<8x1xf32>
    %45 = arith.addf %12, %44 : vector<8x1xf32>
    %46 = vector.extract_strided_slice %17 {offsets = [0, 127], sizes = [8, 1], strides = [1, 1]} : vector<8x128xf32> to vector<8x1xf32>
    %47 = vector.extract_strided_slice %3 {offsets = [8, 0], sizes = [8, 128], strides = [1, 1]} : vector<32x128xf32> to vector<8x128xf32>
    %48 = vector.extract_strided_slice %4 {offsets = [8, 0], sizes = [8, 128], strides = [1, 1]} : vector<32x128xf32> to vector<8x128xf32>
    %49 = vector.extract_strided_slice %8 {offsets = [8, 0], sizes = [8, 128], strides = [1, 1]} : vector<32x128xf32> to vector<8x128xf32>
    %50 = vector.broadcast %46 : vector<8x1xf32> to vector<8x128xf32>
    %51 = arith.addf %49, %50 : vector<8x128xf32>
    %52 = arith.subf %51, %47 : vector<8x128xf32>
    %c4_i32_17 = arith.constant 4 : i32
    %53 = arith.muli %arg0, %c4_i32_17 : i32
    %c1_i32 = arith.constant 1 : i32
    %54 = arith.addi %53, %c1_i32 : i32
    %c128_i32_18 = arith.constant 128 : i32
    %55 = arith.muli %54, %c128_i32_18 : i32
    %56 = arith.sitofp %55 : i32 to f32
    %57 = vector.broadcast %56 : f32 to vector<8x128xf32>
    %58 = arith.addf %10, %57 : vector<8x128xf32>
    %cst_19 = arith.constant 1.000000e+00 : f32
    %59 = vector.broadcast %cst_19 : f32 to vector<8x128xf32>
    %60 = arith.addf %58, %59 : vector<8x128xf32>
    %61 = arith.subf %60, %51 : vector<8x128xf32>
    %62 = arith.subf %58, %52 : vector<8x128xf32>
    %63 = vector.broadcast %5 : vector<8x1xf32> to vector<8x128xf32>
    %64 = arith.subf %63, %51 : vector<8x128xf32>
    %65 = vector.broadcast %5 : vector<8x1xf32> to vector<8x128xf32>
    %66 = arith.addf %65, %61 : vector<8x128xf32>
    %67 = vector.broadcast %5 : vector<8x1xf32> to vector<8x128xf32>
    %68 = arith.addf %67, %62 : vector<8x128xf32>
    %cst_20 = arith.constant 5.000000e-01 : f32
    %69 = vector.broadcast %cst_20 : f32 to vector<8x128xf32>
    %70 = arith.cmpf ogt, %47, %69 : vector<8x128xf32>
    %71 = arith.select %70, %68, %64 : vector<8x128xi1>, vector<8x128xf32>
    %72 = arith.mulf %68, %66 : vector<8x128xf32>
    %cst_21 = arith.constant 9.99999996E-13 : f32
    %73 = vector.broadcast %cst_21 : f32 to vector<8x128xf32>
    %74 = arith.maximumf %72, %73 : vector<8x128xf32>
    %75 = arith.divf %71, %74 : vector<8x128xf32>
    %76 = arith.mulf %48, %75 : vector<8x128xf32>
    %cst_22 = arith.constant dense<0.000000e+00> : vector<8xf32>
    %77 = vector.multi_reduction <add>, %76, %cst_22 [1] : vector<8x128xf32> to vector<8xf32>
    %78 = vector.shape_cast %77 : vector<8xf32> to vector<8x1xf32>
    %79 = arith.addf %45, %78 : vector<8x1xf32>
    %80 = vector.extract_strided_slice %51 {offsets = [0, 127], sizes = [8, 1], strides = [1, 1]} : vector<8x128xf32> to vector<8x1xf32>
    %81 = vector.extract_strided_slice %3 {offsets = [16, 0], sizes = [8, 128], strides = [1, 1]} : vector<32x128xf32> to vector<8x128xf32>
    %82 = vector.extract_strided_slice %4 {offsets = [16, 0], sizes = [8, 128], strides = [1, 1]} : vector<32x128xf32> to vector<8x128xf32>
    %83 = vector.extract_strided_slice %8 {offsets = [16, 0], sizes = [8, 128], strides = [1, 1]} : vector<32x128xf32> to vector<8x128xf32>
    %84 = vector.broadcast %80 : vector<8x1xf32> to vector<8x128xf32>
    %85 = arith.addf %83, %84 : vector<8x128xf32>
    %86 = arith.subf %85, %81 : vector<8x128xf32>
    %c4_i32_23 = arith.constant 4 : i32
    %87 = arith.muli %arg0, %c4_i32_23 : i32
    %c2_i32 = arith.constant 2 : i32
    %88 = arith.addi %87, %c2_i32 : i32
    %c128_i32_24 = arith.constant 128 : i32
    %89 = arith.muli %88, %c128_i32_24 : i32
    %90 = arith.sitofp %89 : i32 to f32
    %91 = vector.broadcast %90 : f32 to vector<8x128xf32>
    %92 = arith.addf %10, %91 : vector<8x128xf32>
    %cst_25 = arith.constant 1.000000e+00 : f32
    %93 = vector.broadcast %cst_25 : f32 to vector<8x128xf32>
    %94 = arith.addf %92, %93 : vector<8x128xf32>
    %95 = arith.subf %94, %85 : vector<8x128xf32>
    %96 = arith.subf %92, %86 : vector<8x128xf32>
    %97 = vector.broadcast %5 : vector<8x1xf32> to vector<8x128xf32>
    %98 = arith.subf %97, %85 : vector<8x128xf32>
    %99 = vector.broadcast %5 : vector<8x1xf32> to vector<8x128xf32>
    %100 = arith.addf %99, %95 : vector<8x128xf32>
    %101 = vector.broadcast %5 : vector<8x1xf32> to vector<8x128xf32>
    %102 = arith.addf %101, %96 : vector<8x128xf32>
    %cst_26 = arith.constant 5.000000e-01 : f32
    %103 = vector.broadcast %cst_26 : f32 to vector<8x128xf32>
    %104 = arith.cmpf ogt, %81, %103 : vector<8x128xf32>
    %105 = arith.select %104, %102, %98 : vector<8x128xi1>, vector<8x128xf32>
    %106 = arith.mulf %102, %100 : vector<8x128xf32>
    %cst_27 = arith.constant 9.99999996E-13 : f32
    %107 = vector.broadcast %cst_27 : f32 to vector<8x128xf32>
    %108 = arith.maximumf %106, %107 : vector<8x128xf32>
    %109 = arith.divf %105, %108 : vector<8x128xf32>
    %110 = arith.mulf %82, %109 : vector<8x128xf32>
    %cst_28 = arith.constant dense<0.000000e+00> : vector<8xf32>
    %111 = vector.multi_reduction <add>, %110, %cst_28 [1] : vector<8x128xf32> to vector<8xf32>
    %112 = vector.shape_cast %111 : vector<8xf32> to vector<8x1xf32>
    %113 = arith.addf %79, %112 : vector<8x1xf32>
    %114 = vector.extract_strided_slice %85 {offsets = [0, 127], sizes = [8, 1], strides = [1, 1]} : vector<8x128xf32> to vector<8x1xf32>
    %115 = vector.extract_strided_slice %3 {offsets = [24, 0], sizes = [8, 128], strides = [1, 1]} : vector<32x128xf32> to vector<8x128xf32>
    %116 = vector.extract_strided_slice %4 {offsets = [24, 0], sizes = [8, 128], strides = [1, 1]} : vector<32x128xf32> to vector<8x128xf32>
    %117 = vector.extract_strided_slice %8 {offsets = [24, 0], sizes = [8, 128], strides = [1, 1]} : vector<32x128xf32> to vector<8x128xf32>
    %118 = vector.broadcast %114 : vector<8x1xf32> to vector<8x128xf32>
    %119 = arith.addf %117, %118 : vector<8x128xf32>
    %120 = arith.subf %119, %115 : vector<8x128xf32>
    %c4_i32_29 = arith.constant 4 : i32
    %121 = arith.muli %arg0, %c4_i32_29 : i32
    %c3_i32 = arith.constant 3 : i32
    %122 = arith.addi %121, %c3_i32 : i32
    %c128_i32_30 = arith.constant 128 : i32
    %123 = arith.muli %122, %c128_i32_30 : i32
    %124 = arith.sitofp %123 : i32 to f32
    %125 = vector.broadcast %124 : f32 to vector<8x128xf32>
    %126 = arith.addf %10, %125 : vector<8x128xf32>
    %cst_31 = arith.constant 1.000000e+00 : f32
    %127 = vector.broadcast %cst_31 : f32 to vector<8x128xf32>
    %128 = arith.addf %126, %127 : vector<8x128xf32>
    %129 = arith.subf %128, %119 : vector<8x128xf32>
    %130 = arith.subf %126, %120 : vector<8x128xf32>
    %131 = vector.broadcast %5 : vector<8x1xf32> to vector<8x128xf32>
    %132 = arith.subf %131, %119 : vector<8x128xf32>
    %133 = vector.broadcast %5 : vector<8x1xf32> to vector<8x128xf32>
    %134 = arith.addf %133, %129 : vector<8x128xf32>
    %135 = vector.broadcast %5 : vector<8x1xf32> to vector<8x128xf32>
    %136 = arith.addf %135, %130 : vector<8x128xf32>
    %cst_32 = arith.constant 5.000000e-01 : f32
    %137 = vector.broadcast %cst_32 : f32 to vector<8x128xf32>
    %138 = arith.cmpf ogt, %115, %137 : vector<8x128xf32>
    %139 = arith.select %138, %136, %132 : vector<8x128xi1>, vector<8x128xf32>
    %140 = arith.mulf %136, %134 : vector<8x128xf32>
    %cst_33 = arith.constant 9.99999996E-13 : f32
    %141 = vector.broadcast %cst_33 : f32 to vector<8x128xf32>
    %142 = arith.maximumf %140, %141 : vector<8x128xf32>
    %143 = arith.divf %139, %142 : vector<8x128xf32>
    %144 = arith.mulf %116, %143 : vector<8x128xf32>
    %cst_34 = arith.constant dense<0.000000e+00> : vector<8xf32>
    %145 = vector.multi_reduction <add>, %144, %cst_34 [1] : vector<8x128xf32> to vector<8xf32>
    %146 = vector.shape_cast %145 : vector<8xf32> to vector<8x1xf32>
    %147 = arith.addf %113, %146 : vector<8x1xf32>
    %148 = vector.extract_strided_slice %119 {offsets = [0, 127], sizes = [8, 1], strides = [1, 1]} : vector<8x128xf32> to vector<8x1xf32>
    %c0_35 = arith.constant 0 : index
    %c0_36 = arith.constant 0 : index
    %149 = vector.load %arg6[%c0_35, %c0_36] : memref<8x1xf32, #tpu.memory_space<vmem>>, vector<8x1xf32>
    tpu.vector_store %arg6[%c0_35, %c0_36], %148 {strides = array<i32>} : memref<8x1xf32, #tpu.memory_space<vmem>>, vector<8x1xf32>,
    %c0_37 = arith.constant 0 : index
    %c0_38 = arith.constant 0 : index
    %150 = vector.load %arg7[%c0_37, %c0_38] : memref<8x1xf32, #tpu.memory_space<vmem>>, vector<8x1xf32>
    tpu.vector_store %arg7[%c0_37, %c0_38], %147 {strides = array<i32>} : memref<8x1xf32, #tpu.memory_space<vmem>>, vector<8x1xf32>,
    %c1_i32_39 = arith.constant 1 : i32
    %151 = arith.cmpi eq, %arg0, %c1_i32_39 : i32
    %152 = arith.extui %151 : i1 to i32
    %c0_i32_40 = arith.constant 0 : i32
    %153 = arith.cmpi ne, %152, %c0_i32_40 : i32
    scf.if %153 {
      %cst_41 = arith.constant 0.000000e+00 : f32
      %154 = vector.broadcast %cst_41 : f32 to vector<8x1xf32>
      %155 = arith.cmpf ogt, %5, %154 : vector<8x1xf32>
      %156 = arith.extui %155 : vector<8x1xi1> to vector<8x1xi32>
      %157 = arith.sitofp %156 : vector<8x1xi32> to vector<8x1xf32>
      %158 = arith.mulf %147, %157 : vector<8x1xf32>
      %159 = vector.shape_cast %158 : vector<8x1xf32> to vector<1x8x1xf32>
      %cst_42 = arith.constant dense<0.000000e+00> : vector<1xf32>
      %160 = vector.multi_reduction <add>, %159, %cst_42 [1, 2] : vector<1x8x1xf32> to vector<1xf32>
      %161 = vector.shape_cast %160 : vector<1xf32> to vector<1x1x1xf32>
      %162 = vector.extract %161[0, 0, 0] : f32 from vector<1x1x1xf32>
      %163 = vector.shape_cast %157 : vector<8x1xf32> to vector<1x8x1xf32>
      %cst_43 = arith.constant dense<0.000000e+00> : vector<1xf32>
      %164 = vector.multi_reduction <add>, %163, %cst_43 [1, 2] : vector<1x8x1xf32> to vector<1xf32>
      %165 = vector.shape_cast %164 : vector<1xf32> to vector<1x1x1xf32>
      %166 = vector.extract %165[0, 0, 0] : f32 from vector<1x1x1xf32>
      %cst_44 = arith.constant 0.000000e+00 : f32
      %167 = arith.cmpf ogt, %166, %cst_44 : f32
      %cst_45 = arith.constant 1.000000e+00 : f32
      %168 = arith.maximumf %166, %cst_45 : f32
      %169 = arith.divf %162, %168 : f32
      %cst_46 = arith.constant 0.000000e+00 : f32
      %170 = arith.select %167, %169, %cst_46 : f32
      %171 = vector.broadcast %170 : f32 to vector<1x1xf32>
      %c0_47 = arith.constant 0 : index
      %c0_48 = arith.constant 0 : index
      %172 = vector.load %arg5[%c0_47, %c0_48] : memref<1x1xf32, #tpu.memory_space<vmem>>, vector<1x1xf32>
      tpu.vector_store %arg5[%c0_47, %c0_48], %171 {strides = array<i32>} : memref<1x1xf32, #tpu.memory_space<vmem>>, vector<1x1xf32>,
    } else {
    }
    return
  }
  func.func @transform_0(%arg0: i32) -> (i32, i32) {
    %c0_i32 = arith.constant 0 : i32
    %c0_i32_0 = arith.constant 0 : i32
    %c0_i32_1 = arith.constant 0 : i32
    return %c0_i32, %c0_i32_0 : i32, i32
  }
  func.func @transform_1(%arg0: i32) -> (i32, i32) {
    %c0_i32 = arith.constant 0 : i32
    %c0_i32_0 = arith.constant 0 : i32
    %c0_i32_1 = arith.constant 0 : i32
    return %c0_i32, %c0_i32_0 : i32, i32
  }
  func.func @transform_2(%arg0: i32) -> (i32, i32) {
    %c0_i32 = arith.constant 0 : i32
    %c0_i32_0 = arith.constant 0 : i32
    return %arg0, %c0_i32 : i32, i32
  }
  func.func @transform_3(%arg0: i32) -> (i32, i32) {
    %c0_i32 = arith.constant 0 : i32
    %c0_i32_0 = arith.constant 0 : i32
    return %arg0, %c0_i32 : i32, i32
  }
  func.func @transform_4(%arg0: i32) -> (i32, i32) {
    %c0_i32 = arith.constant 0 : i32
    %c0_i32_0 = arith.constant 0 : i32
    %c0_i32_1 = arith.constant 0 : i32
    return %c0_i32, %c0_i32_0 : i32, i32
  }
}

</mosaic_0001>

<llo_original>
// kernel: tpu_custom_call.1
$region0: #{tpu_custom_call.1}
  #allocation0 [shape = 'u32[]', space=smem, size = 0x4, offset = 0x4, fixed_abs, tag = 'smem constant byte address 0x4 - core index']
  #allocation1 [shape = 'u32[144,128]{1,0:T(1,128)}', space=vmem, size = 0x12000, scoped, tag = 'internal scratch']
  #allocation2 [shape = 'f32[8,1]{1,0:T(8,128)}', space=vmem, size = 0x1000, scoped, tag = 'scratch operand']
  #allocation3 [shape = 'f32[8,1]{1,0:T(8,128)}', space=vmem, size = 0x1000, scoped, tag = 'scratch operand']
  %s0 = inlined_call_operand.vmem [shape: f32[8,1], index: 0, kind: input, shape index: {}]
  %s1 = inlined_call_operand.hbm [shape: bf16[128,128], index: 1, kind: input, shape index: {}]
  %s2 = inlined_call_operand.hbm [shape: f32[64,128], index: 2, kind: input, shape index: {}]
  %s3 = inlined_call_operand.hbm [shape: f32[64,128], index: 3, kind: input, shape index: {}]
  %s4 = inlined_call_operand.hbm [shape: f32[1,1], index: 4, kind: output, shape index: {}]
  %s5 = sld [smem:[#allocation0]]
  $region69: #{tpu_custom_call.1} parent=0
    _
  %s7 = ssub.s32 1, %s5
  %s8 = scalar_select 0, %s7, %s5
  $region1: #{tpu_custom_call.1} parent=0
    #allocation4 [shape = 'u8[32768]{0}', space=vmem, size = 0x8000, scoped, tag = 'input window, operand 1, single buffered']
    #allocation5 [shape = 's32[2]{0}', space=sflag, size = 0x8, scoped, tag = 'scoped memory for tpu_custom_call.1']
    #allocation6 [shape = 's32[2]{0}', space=sflag, size = 0x8, scoped, tag = 'scoped memory for tpu_custom_call.1']
    #allocation7 [shape = 'u8[32768]{0}', space=vmem, size = 0x8000, scoped, tag = 'input window, operand 2']
    #allocation8 [shape = 's32[2]{0}', space=sflag, size = 0x8, scoped, tag = 'scoped memory for tpu_custom_call.1']
    #allocation9 [shape = 'u8[32768]{0}', space=vmem, size = 0x8000, scoped, tag = 'input window, operand 3']
    #allocation10 [shape = 'u8[512]{0}', space=vmem, size = 0x400, scoped, tag = 'output window, operand 0, single buffered']
    %9 = vsyncpa [#allocation5], 0
    %10 = vsyncpa [#allocation8], 0
    %s11 = scalar_lea.sflag [#allocation8], 1
    %12 = vsyncpa %s11, 0
    %13 = vsyncpa [#allocation6], 0
    loop: start=0, step=1, limit=4
    $region2: #{tpu_custom_call.1} parent=1 // loop_pre_header
      _
    $region3: #{tpu_custom_call.1} parent=1 // loop_header
      %s15 = sphi 0, %s19
      %p16 = scmp.ge.s32.totalorder %s15, 4
      %s23 = sphi 0, %s23
      %s25 = sphi 0, %s23
      %s26 = sphi 0, %s25
      %s40 = sphi 0, %s26
      %s44 = sphi 0, %s44
      %s46 = sphi 0, %s44
      %s47 = sphi 0, %s46
      %s61 = sphi 0, %s47
      %s67 = sphi 0, %s69
      %s70 = sphi 0, %s67
      %s71 = sphi 0, %s70
      %s87 = sphi 0, %s71
      %s93 = sphi 0, %s95
      %s96 = sphi 0, %s93
      %s97 = sphi 0, %s96
      %s113 = sphi 0, %s97
      %s117 = sphi 0, %s117
      %s119 = sphi 0, %s117
      %s120 = sphi 0, %s119
      %s134 = sphi 0, %s120
    $region4: #{tpu_custom_call.1} parent=1 // loop_header_branch
      %18 = sbr.rel (%p16) target = $region8
    $region5: #{tpu_custom_call.1} parent=1 // loop_body
      %s20 = ssub.s32 %s15, 1
      %s21 = ssub.s32 %s15, 2
      %s22 = sadd.s32 %s15, 1
      %s24 = sadd.s32 %s23, 1
      %p27 = scmp.eq.s32.totalorder %s15, 1
      %p28 = scmp.ne.s32.totalorder %s23, %s25
      %p29 = scmp.eq.s32.totalorder %s15, 0
      %p30 = por %p28, %p29
      %p31 = scmp.ne.s32.totalorder %s23, %s25
      %p32 = scmp.eq.s32.totalorder %s20, 1
      %p33 = por %p31, %p32
      %p34 = scmp.ne.s32.totalorder %s25, %s26
      %p35 = scmp.eq.s32.totalorder %s20, 0
      %p36 = por %p34, %p35
      %p37 = scmp.ne.s32.totalorder %s25, %s26
      %p38 = scmp.eq.s32.totalorder %s21, 1
      %p39 = por %p37, %p38
      %p41 = scmp.ne.s32.totalorder %s26, %s40
      %p42 = scmp.eq.s32.totalorder %s21, 0
      %p43 = por %p41, %p42
      %s45 = sadd.s32 %s44, 1
      %p48 = scmp.eq.s32.totalorder %s15, 1
      %p49 = scmp.ne.s32.totalorder %s44, %s46
      %p50 = scmp.eq.s32.totalorder %s15, 0
      %p51 = por %p49, %p50
      %p52 = scmp.ne.s32.totalorder %s44, %s46
      %p53 = scmp.eq.s32.totalorder %s20, 1
      %p54 = por %p52, %p53
      %p55 = scmp.ne.s32.totalorder %s46, %s47
      %p56 = scmp.eq.s32.totalorder %s20, 0
      %p57 = por %p55, %p56
      %p58 = scmp.ne.s32.totalorder %s46, %s47
      %p59 = scmp.eq.s32.totalorder %s21, 1
      %p60 = por %p58, %p59
      %p62 = scmp.ne.s32.totalorder %s47, %s61
      %p63 = scmp.eq.s32.totalorder %s21, 0
      %p64 = por %p62, %p63
      %s65 = ssub.s32 %s15, %s22
      %p66 = scmp.eq.s32.totalorder %s65, 0
      %s68 = sadd.s32 %s67, 1
      %s69 = scalar_select %p66, %s67, %s68
      %p72 = pneg %p66
      %p73 = scmp.eq.s32.totalorder %s15, 1
      %p74 = por %p72, %p73
      %p75 = scmp.ne.s32.totalorder %s67, %s70
      %p76 = scmp.eq.s32.totalorder %s15, 0
      %p77 = por %p75, %p76
      %p78 = scmp.ne.s32.totalorder %s67, %s70
      %p79 = scmp.eq.s32.totalorder %s20, 1
      %p80 = por %p78, %p79
      %p81 = scmp.ne.s32.totalorder %s70, %s71
      %p82 = scmp.eq.s32.totalorder %s20, 0
      %p83 = por %p81, %p82
      %p84 = scmp.ne.s32.totalorder %s70, %s71
      %p85 = scmp.eq.s32.totalorder %s21, 1
      %p86 = por %p84, %p85
      %p88 = scmp.ne.s32.totalorder %s71, %s87
      %p89 = scmp.eq.s32.totalorder %s21, 0
      %p90 = por %p88, %p89
      %s91 = ssub.s32 %s15, %s22
      %p92 = scmp.eq.s32.totalorder %s91, 0
      %s94 = sadd.s32 %s93, 1
      %s95 = scalar_select %p92, %s93, %s94
      %p98 = pneg %p92
      %p99 = scmp.eq.s32.totalorder %s15, 1
      %p100 = por %p98, %p99
      %p101 = scmp.ne.s32.totalorder %s93, %s96
      %p102 = scmp.eq.s32.totalorder %s15, 0
      %p103 = por %p101, %p102
      %p104 = scmp.ne.s32.totalorder %s93, %s96
      %p105 = scmp.eq.s32.totalorder %s20, 1
      %p106 = por %p104, %p105
      %p107 = scmp.ne.s32.totalorder %s96, %s97
      %p108 = scmp.eq.s32.totalorder %s20, 0
      %p109 = por %p107, %p108
      %p110 = scmp.ne.s32.totalorder %s96, %s97
      %p111 = scmp.eq.s32.totalorder %s21, 1
      %p112 = por %p110, %p111
      %p114 = scmp.ne.s32.totalorder %s97, %s113
      %p115 = scmp.eq.s32.totalorder %s21, 0
      %p116 = por %p114, %p115
      %s118 = sadd.s32 %s117, 1
      %p121 = scmp.eq.s32.totalorder %s15, 1
      %p122 = scmp.ne.s32.totalorder %s117, %s119
      %p123 = scmp.eq.s32.totalorder %s15, 0
      %p124 = por %p122, %p123
      %p125 = scmp.ne.s32.totalorder %s117, %s119
      %p126 = scmp.eq.s32.totalorder %s20, 1
      %p127 = por %p125, %p126
      %p128 = scmp.ne.s32.totalorder %s119, %s120
      %p129 = scmp.eq.s32.totalorder %s20, 0
      %p130 = por %p128, %p129
      %p131 = scmp.ne.s32.totalorder %s119, %s120
      %p132 = scmp.eq.s32.totalorder %s21, 1
      %p133 = por %p131, %p132
      %p135 = scmp.ne.s32.totalorder %s120, %s134
      %p136 = scmp.eq.s32.totalorder %s21, 0
      %p137 = por %p135, %p136
      %p138 = scmp.le.s32.totalorder 1, %s15
      %p139 = scmp.lt.s32.totalorder %s15, 3
      %p140 = pnand %p138, %p139
      %p141 = pneg %p140
      // Predicated region
      $region9: #{tpu_custom_call.1} parent=5 // pred_check
        _
      $region10: #{tpu_custom_call.1} parent=5 // pred_check_branch
        %143 = sbr.rel (%p140) target = $region12
      $region11: #{tpu_custom_call.1} parent=5 // pred_region
        %s144 = ssub.s32 %s15, 1
        // Predicated region
        $region13: #{tpu_custom_call.1} parent=11 // pred_check
          %p145 = pneg %p36
        $region14: #{tpu_custom_call.1} parent=11 // pred_check_branch
          %147 = sbr.rel (%p145) target = $region16
        $region15: #{tpu_custom_call.1} parent=11 // pred_region
          _
        $region16: #{tpu_custom_call.1} parent=11 // pred_fallthru
          _
        // Predicated region
        $region17: #{tpu_custom_call.1} parent=11 // pred_check
          %p148 = pneg %p57
        $region18: #{tpu_custom_call.1} parent=11 // pred_check_branch
          %150 = sbr.rel (%p148) target = $region20
        $region19: #{tpu_custom_call.1} parent=11 // pred_region
          %s152 = ssub.s32 1024, 1024
          %153 = vsyncadd [#allocation5], %s152
          %s154 = sshll.u32 [#allocation4], 4
          %s155 = int_to_ptr.vmem [resolvable:$true] %s154
          %160 = dma.hbm_to_vmem [thread:$0]  %s1, 1024, %s155, [#allocation5], 64, 64, 4
        $region20: #{tpu_custom_call.1} parent=11 // pred_fallthru
          _
      $region12: #{tpu_custom_call.1} parent=5 // pred_fallthru
        _
      %p161 = scmp.lt.s32.totalorder %s15, 2
      // Predicated region
      $region21: #{tpu_custom_call.1} parent=5 // pred_check
        %p162 = pneg %p161
      $region22: #{tpu_custom_call.1} parent=5 // pred_check_branch
        %164 = sbr.rel (%p162) target = $region24
      $region23: #{tpu_custom_call.1} parent=5 // pred_region
        // Predicated region
        $region25: #{tpu_custom_call.1} parent=23 // pred_check
          %p165 = pneg %p77
        $region26: #{tpu_custom_call.1} parent=23 // pred_check_branch
          %167 = sbr.rel (%p165) target = $region28
        $region27: #{tpu_custom_call.1} parent=23 // pred_region
          %s168 = sand.u32 %s15, 1
          %s169 = scalar_lea.sflag [#allocation8], %s168
          %s170 = sand.u32 %s67, 1
          %s171 = smul.addr %s170, 32
          %s172 = scalar_lea.vmem [#allocation7], %s171
          %s173 = smul.u32 4, %s15
          %s175 = ssub.s32 512, 512
          %176 = vsyncadd %s169, %s175
          %s177 = smul.addr %s173, 128
          %s178 = scalar_lea.hbm %s2, %s177
          %s179 = sshll.u32 %s172, 4
          %s180 = int_to_ptr.vmem [resolvable:$true] %s179
          %185 = dma.hbm_to_vmem [thread:$0]  %s178, 512, %s180, %s169, 128, 128, 8
        $region28: #{tpu_custom_call.1} parent=23 // pred_fallthru
          _
        // Predicated region
        $region29: #{tpu_custom_call.1} parent=23 // pred_check
          %p186 = pneg %p103
        $region30: #{tpu_custom_call.1} parent=23 // pred_check_branch
          %188 = sbr.rel (%p186) target = $region32
        $region31: #{tpu_custom_call.1} parent=23 // pred_region
          %s189 = sand.u32 %s15, 1
          %s190 = scalar_lea.sflag [#allocation8], %s189
          %s191 = sand.u32 %s93, 1
          %s192 = smul.addr %s191, 32
          %s193 = scalar_lea.vmem [#allocation9], %s192
          %s194 = smul.u32 4, %s15
          %s196 = ssub.s32 512, 512
          %197 = vsyncadd %s190, %s196
          %s198 = smul.addr %s194, 128
          %s199 = scalar_lea.hbm %s3, %s198
          %s200 = sshll.u32 %s193, 4
          %s201 = int_to_ptr.vmem [resolvable:$true] %s200
          %206 = dma.hbm_to_vmem [thread:$0]  %s199, 512, %s201, %s190, 128, 128, 8
        $region32: #{tpu_custom_call.1} parent=23 // pred_fallthru
          _
      $region24: #{tpu_custom_call.1} parent=5 // pred_fallthru
        _
      %p207 = scmp.le.s32.totalorder 1, %s15
      %p208 = scmp.lt.s32.totalorder %s15, 3
      %p209 = pnand %p207, %p208
      %p210 = pneg %p209
      // Predicated region
      $region33: #{tpu_custom_call.1} parent=5 // pred_check
        _
      $region34: #{tpu_custom_call.1} parent=5 // pred_check_branch
        %212 = sbr.rel (%p209) target = $region36
      $region35: #{tpu_custom_call.1} parent=5 // pred_region
        %s213 = ssub.s32 %s15, 1
        // Predicated region
        $region37: #{tpu_custom_call.1} parent=35 // pred_check
          %p214 = pneg %p57
        $region38: #{tpu_custom_call.1} parent=35 // pred_check_branch
          %216 = sbr.rel (%p214) target = $region40
        $region39: #{tpu_custom_call.1} parent=35 // pred_region
          %217 = dma.done [#allocation5], 1024
        $region40: #{tpu_custom_call.1} parent=35 // pred_fallthru
          _
        %s218 = sand.u32 %s20, 1
        %s219 = scalar_lea.sflag [#allocation8], %s218
        %s220 = sand.u32 %s70, 1
        %s221 = smul.addr %s220, 32
        %s222 = scalar_lea.vmem [#allocation7], %s221
        // Predicated region
        $region41: #{tpu_custom_call.1} parent=35 // pred_check
          %p223 = pneg %p83
        $region42: #{tpu_custom_call.1} parent=35 // pred_check_branch
          %225 = sbr.rel (%p223) target = $region44
        $region43: #{tpu_custom_call.1} parent=35 // pred_region
          %226 = dma.done %s219, 512
        $region44: #{tpu_custom_call.1} parent=35 // pred_fallthru
          _
        %s227 = sand.u32 %s20, 1
        %s228 = scalar_lea.sflag [#allocation8], %s227
        %s229 = sand.u32 %s96, 1
        %s230 = smul.addr %s229, 32
        %s231 = scalar_lea.vmem [#allocation9], %s230
        // Predicated region
        $region45: #{tpu_custom_call.1} parent=35 // pred_check
          %p232 = pneg %p109
        $region46: #{tpu_custom_call.1} parent=35 // pred_check_branch
          %234 = sbr.rel (%p232) target = $region48
        $region47: #{tpu_custom_call.1} parent=35 // pred_region
          %235 = dma.done %s228, 512
        $region48: #{tpu_custom_call.1} parent=35 // pred_fallthru
          _
        %p236 = pneg %p36
        %p237 = pneg %p33
        %p238 = pneg %p57
        %p239 = pneg %p54
        %s240 = sand.u32 %s20, 1
        %s241 = scalar_lea.sflag [#allocation8], %s240
        %s242 = sand.u32 %s70, 1
        %s243 = smul.addr %s242, 32
        %s244 = scalar_lea.vmem [#allocation7], %s243
        %p245 = pneg %p83
        %p246 = pneg %p80
        %s247 = sand.u32 %s20, 1
        %s248 = scalar_lea.sflag [#allocation8], %s247
        %s249 = sand.u32 %s96, 1
        %s250 = smul.addr %s249, 32
        %s251 = scalar_lea.vmem [#allocation9], %s250
        %p252 = pneg %p109
        %p253 = pneg %p106
        %p254 = pneg %p130
        %p255 = pneg %p127
        %s256 = smul.u32 4, %s20
        %s257 = smul.u32 4, %s20
        %p259 = scmp.eq.s32.totalorder %s20, 0
        // Predicated region
        $region49: #{tpu_custom_call.1} parent=35 // pred_check
          %p260 = pneg %p259
        $region50: #{tpu_custom_call.1} parent=35 // pred_check_branch
          %262 = sbr.rel (%p260) target = $region52
        $region51: #{tpu_custom_call.1} parent=35 // pred_region
          %vm263 = vcmask 7168
          %264 = vst.msk [vmem:[#allocation2] sm:$0xff] %vm263, 0.0
          %265 = vst.msk [vmem:[#allocation3] sm:$0xff] %vm263, 0.0
        $region52: #{tpu_custom_call.1} parent=35 // pred_fallthru
          _
        %v266 = vld [vmem:[%s231] sm:$0xff]
        %v267 = vld [vmem:[%s231 + $0x8] sm:$0xff]
        %v268 = vld [vmem:[%s231 + $0x10] sm:$0xff]
        %v269 = vld [vmem:[%s231 + $0x18] sm:$0xff]
        %v270 = vld [vmem:[%s222] sm:$0xff]
        %v271 = vld [vmem:[%s222 + $0x8] sm:$0xff]
        %v272 = vld [vmem:[%s222 + $0x10] sm:$0xff]
        %v273 = vld [vmem:[%s222 + $0x18] sm:$0xff]
        %v274 = vld [vmem:[%s0] sm:$0xff]
        %v275 = vpack.c.bf16 %v267, %v266
        %v276 = vpack.c.bf16 %v269, %v268
        %v277 = vld [vmem:[#allocation4] sm:$0xf]
        %v278 = vld [vmem:[#allocation4 + $0x4] sm:$0xf]
        %v279 = vld [vmem:[#allocation4 + $0x8] sm:$0xf]
        %v280 = vld [vmem:[#allocation4 + $0xc] sm:$0xf]
        %v281 = vld [vmem:[#allocation4 + $0x10] sm:$0xf]
        %v282 = vld [vmem:[#allocation4 + $0x14] sm:$0xf]
        %v283 = vld [vmem:[#allocation4 + $0x18] sm:$0xf]
        %v284 = vld [vmem:[#allocation4 + $0x1c] sm:$0xf]
        %v285 = vld [vmem:[#allocation4 + $0x20] sm:$0xf]
        %v286 = vld [vmem:[#allocation4 + $0x24] sm:$0xf]
        %v287 = vld [vmem:[#allocation4 + $0x28] sm:$0xf]
        %v288 = vld [vmem:[#allocation4 + $0x2c] sm:$0xf]
        %v289 = vld [vmem:[#allocation4 + $0x30] sm:$0xf]
        %v290 = vld [vmem:[#allocation4 + $0x34] sm:$0xf]
        %v291 = vld [vmem:[#allocation4 + $0x38] sm:$0xf]
        %v292 = vld [vmem:[#allocation4 + $0x3c] sm:$0xf]
        %v309 = vunpack.c.l.b16 %v277
        %v310 = vunpack.c.l.b16 %v278
        %v311 = vunpack.c.l.b16 %v279
        %v312 = vunpack.c.l.b16 %v280
        %v313 = vunpack.c.l.b16 %v281
        %v314 = vunpack.c.l.b16 %v282
        %v315 = vunpack.c.l.b16 %v283
        %v316 = vunpack.c.l.b16 %v284
        %v317 = vunpack.c.l.b16 %v285
        %v318 = vunpack.c.l.b16 %v286
        %v319 = vunpack.c.l.b16 %v287
        %v320 = vunpack.c.l.b16 %v288
        %v321 = vunpack.c.l.b16 %v289
        %v322 = vunpack.c.l.b16 %v290
        %v323 = vunpack.c.l.b16 %v291
        %v324 = vunpack.c.l.b16 %v292
        %v325 = vpack.c.b16 %v310, %v309
        %v326 = vpack.c.b16 %v312, %v311
        %v327 = vpack.c.b16 %v314, %v313
        %v328 = vpack.c.b16 %v316, %v315
        %v329 = vpack.c.b16 %v318, %v317
        %v330 = vpack.c.b16 %v320, %v319
        %v331 = vpack.c.b16 %v322, %v321
        %v332 = vpack.c.b16 %v324, %v323
        %341 = vmatprep.subr.bf16.mxu0 0
        %342 = vmatpush1.bf16.msra.mxu0 %v325
        %343 = vmatprep.subr.bf16.mxu0 0
        %344 = vmatpush1.bf16.msra.mxu0 %v326
        %345 = vmatprep.subr.bf16.mxu0 0
        %346 = vmatpush1.bf16.msra.mxu0 %v327
        %347 = vmatprep.subr.bf16.mxu0 0
        %348 = vmatpush1.bf16.msra.mxu0 %v328
        %349 = vmatprep.subr.bf16.mxu0 0
        %350 = vmatpush1.bf16.msra.mxu0 %v329
        %351 = vmatprep.subr.bf16.mxu0 0
        %352 = vmatpush1.bf16.msra.mxu0 %v330
        %353 = vmatprep.subr.bf16.mxu0 0
        %354 = vmatpush1.bf16.msra.mxu0 %v331
        %355 = vmatprep.subr.bf16.mxu0 0
        %356 = vmatpush1.bf16.msra.mxu0 %v332
        %357 = vmatprep.subr.bf16.mxu0 0
        %358 = vmatpush1.bf16.msra.mxu0 0
        %359 = vmatprep.subr.bf16.mxu0 0
        %360 = vmatpush1.bf16.msra.mxu0 0
        %361 = vmatprep.subr.bf16.mxu0 0
        %362 = vmatpush1.bf16.msra.mxu0 0
        %363 = vmatprep.subr.bf16.mxu0 0
        %364 = vmatpush1.bf16.msra.mxu0 0
        %365 = vmatprep.subr.bf16.mxu0 0
        %366 = vmatpush1.bf16.msra.mxu0 0
        %367 = vmatprep.subr.bf16.mxu0 0
        %368 = vmatpush1.bf16.msra.mxu0 0
        %369 = vmatprep.subr.bf16.mxu0 0
        %370 = vmatpush1.bf16.msra.mxu0 0
        %371 = vmatprep.subr.bf16.mxu0 0
        %372 = vmatpush1.bf16.msra.mxu0 0
        %373 = vmatprep.mubr.bf16.mxu0 0
        %374 = vmatmul.mubr.bf16.gmra.mrb[0].mxu0 %v275
        %v375 = vpop.f32.mrb[0].mxu0
        %v376 = vadd.f32 0.0, %v375
        %v377 = vpop.f32.mrb[0].mxu0
        %v378 = vpop.f32.mrb[0].mxu0
        %v379 = vadd.f32 0.0, %v378
        %v380 = vpop.f32.mrb[0].mxu0
        %381 = vmatprep.mubr.bf16.mxu0 0
        %382 = vmatmul.mubr.bf16.gmra.mrb[0].mxu0 %v276
        %v383 = vpop.f32.mrb[0].mxu0
        %v384 = vadd.f32 0.0, %v383
        %v385 = vpop.f32.mrb[0].mxu0
        %v386 = vpop.f32.mrb[0].mxu0
        %v387 = vadd.f32 0.0, %v386
        %v388 = vpop.f32.mrb[0].mxu0
        %389 = vdwg.mxu0
        %v390 = vlaneseq
        %v391 = vand.u32 %v390, 127
        %v392 = vcvt.s32.f32 %v391
        %v393 = vld [vmem:[#allocation2] sm:$0xff]
        %v394 = vld [vmem:[#allocation3] sm:$0xff]
        %396 = vset.pattern.permute.xlu0 0
        %397 = vperm.xlu0 %396, %v393
        %v398 = vpop.permute.xlu0 %397
        %v400 = vadd.f32 %v376, %v398
        %v401 = vsub.f32 %v400, %v266
        %s402 = smul.u32 %s20, 512
        %s403 = scvt.s32.f32 %s402
        %v404 = vstv %s403
        %v405 = vadd.f32 %v392, %v404
        %v406 = vadd.f32 %v405, 1.0
        %v407 = vsub.f32 %v406, %v400
        %v408 = vsub.f32 %v405, %v401
        %410 = vset.pattern.permute.xlu0 0
        %411 = vperm.xlu0 %410, %v274
        %v412 = vpop.permute.xlu0 %411
        %v414 = vsub.f32 %v412, %v400
        %v415 = vadd.f32 %v412, %v407
        %v416 = vadd.f32 %v412, %v408
        %vm417 = vcmp.gt.f32.partialorder %v266, 0.5
        %v418 = vsel %vm417, %v416, %v414
        %v419 = vmul.f32 %v416, %v415
        %v420 = vmax.f32 %v419, 1e-12
        %v421 = vrcp.pop %v420
        %v422 = vmul.f32 %v418, %v421
        %v423 = vmul.f32 %v270, %v422
        %424 = vadd.xlane.f32.xlu0 %v423
        %v425 = vpop.xlane.xlu0 %424
        %v426 = vadd.f32 %v394, %v425
        %428 = vset.pattern.permute.xlu0 127
        %429 = vperm.xlu0 %428, %v400
        %v430 = vpop.permute.xlu0 %429
        %v432 = vadd.f32 %v379, %v430
        %v433 = vsub.f32 %v432, %v267
        %s434 = smul.u32 %s20, 4
        %s435 = sadd.s32 %s434, 1
        %s436 = smul.u32 %s435, 128
        %s437 = scvt.s32.f32 %s436
        %v438 = vstv %s437
        %v439 = vadd.f32 %v392, %v438
        %v440 = vadd.f32 %v439, 1.0
        %v441 = vsub.f32 %v440, %v432
        %v442 = vsub.f32 %v439, %v433
        %v443 = vsub.f32 %v412, %v432
        %v444 = vadd.f32 %v412, %v441
        %v445 = vadd.f32 %v412, %v442
        %vm446 = vcmp.gt.f32.partialorder %v267, 0.5
        %v447 = vsel %vm446, %v445, %v443
        %v448 = vmul.f32 %v445, %v444
        %v449 = vmax.f32 %v448, 1e-12
        %v450 = vrcp.pop %v449
        %v451 = vmul.f32 %v447, %v450
        %v452 = vmul.f32 %v271, %v451
        %453 = vadd.xlane.f32.xlu0 %v452
        %v454 = vpop.xlane.xlu0 %453
        %v455 = vadd.f32 %v426, %v454
        %457 = vset.pattern.permute.xlu0 127
        %458 = vperm.xlu0 %457, %v432
        %v459 = vpop.permute.xlu0 %458
        %v461 = vadd.f32 %v384, %v459
        %v462 = vsub.f32 %v461, %v268
        %s463 = sadd.s32 %s434, 2
        %s464 = smul.u32 %s463, 128
        %s465 = scvt.s32.f32 %s464
        %v466 = vstv %s465
        %v467 = vadd.f32 %v392, %v466
        %v468 = vadd.f32 %v467, 1.0
        %v469 = vsub.f32 %v468, %v461
        %v470 = vsub.f32 %v467, %v462
        %v471 = vsub.f32 %v412, %v461
        %v472 = vadd.f32 %v412, %v469
        %v473 = vadd.f32 %v412, %v470
        %vm474 = vcmp.gt.f32.partialorder %v268, 0.5
        %v475 = vsel %vm474, %v473, %v471
        %v476 = vmul.f32 %v473, %v472
        %v477 = vmax.f32 %v476, 1e-12
        %v478 = vrcp.pop %v477
        %v479 = vmul.f32 %v475, %v478
        %v480 = vmul.f32 %v272, %v479
        %481 = vadd.xlane.f32.xlu0 %v480
        %v482 = vpop.xlane.xlu0 %481
        %v483 = vadd.f32 %v455, %v482
        %485 = vset.pattern.permute.xlu0 127
        %486 = vperm.xlu0 %485, %v461
        %v487 = vpop.permute.xlu0 %486
        %v489 = vadd.f32 %v387, %v487
        %v490 = vsub.f32 %v489, %v269
        %s491 = sadd.s32 %s434, 3
        %s492 = smul.u32 %s491, 128
        %s493 = scvt.s32.f32 %s492
        %v494 = vstv %s493
        %v495 = vadd.f32 %v392, %v494
        %v496 = vadd.f32 %v495, 1.0
        %v497 = vsub.f32 %v496, %v489
        %v498 = vsub.f32 %v495, %v490
        %v499 = vsub.f32 %v412, %v489
        %v500 = vadd.f32 %v412, %v497
        %v501 = vadd.f32 %v412, %v498
        %vm502 = vcmp.gt.f32.partialorder %v269, 0.5
        %v503 = vsel %vm502, %v501, %v499
        %v504 = vmul.f32 %v501, %v500
        %v505 = vmax.f32 %v504, 1e-12
        %v506 = vrcp.pop %v505
        %v507 = vmul.f32 %v503, %v506
        %v508 = vmul.f32 %v273, %v507
        %509 = vadd.xlane.f32.xlu0 %v508
        %v510 = vpop.xlane.xlu0 %509
        %v511 = vadd.f32 %v483, %v510
        %513 = vrot.lane.b32.xlu0 %v489, 1
        %v514 = vpop.permute.xlu0 %513
        %vm516 = vcmask 7168
        %517 = vst.msk [vmem:[#allocation2] sm:$0xff] %vm516, %v514
        %518 = vst.msk [vmem:[#allocation3] sm:$0xff] %vm516, %v511
        %p519 = scmp.eq.s32.totalorder %s20, 1
        // Predicated region
        $region53: #{tpu_custom_call.1} parent=35 // pred_check
          %p520 = pneg %p519
        $region54: #{tpu_custom_call.1} parent=35 // pred_check_branch
          %522 = sbr.rel (%p520) target = $region56
        $region55: #{tpu_custom_call.1} parent=35 // pred_region
          %vm523 = vcmp.gt.f32.partialorder %v274, 0.0
          %v524 = vsel %vm523, 1, 0
          %v525 = vcvt.s32.f32 %v524
          %v526 = vmul.f32 %v511, %v525
          %v527 = vsel %vm516, %v526, 0.0
          %528 = vadd.xlane.f32.xlu0 %v527
          %v529 = vpop.xlane.xlu0 %528
          %v530 = vrot.slane %v529, 4
          %v531 = vadd.f32 %v529, %v530
          %v532 = vrot.slane %v531, 2
          %v533 = vadd.f32 %v531, %v532
          %v534 = vrot.slane %v533, 1
          %v535 = vadd.f32 %v533, %v534
          %s536 = vtos %v535
          %v537 = vsel %vm516, %v525, 0.0
          %538 = vadd.xlane.f32.xlu0 %v537
          %v539 = vpop.xlane.xlu0 %538
          %v540 = vrot.slane %v539, 4
          %v541 = vadd.f32 %v539, %v540
          %v542 = vrot.slane %v541, 2
          %v543 = vadd.f32 %v541, %v542
          %v544 = vrot.slane %v543, 1
          %v545 = vadd.f32 %v543, %v544
          %s546 = vtos %v545
          %p547 = scmp.gt.f32.partialorder %s546, 0.0
          %s548 = smax.f32 %s546, 1.0
          %v549 = vstv %s548
          %v550 = vrcp.pop %v549
          %s551 = vtos %v550
          %s552 = smul.f32 %s536, %s551
          %s553 = scalar_select %p547, %s552, 0.0
          %v554 = vstv %s553
          %vm555 = vcmask 0
          %556 = vst.msk [vmem:[#allocation10] sm:$0x1] %vm555, %v554
        $region56: #{tpu_custom_call.1} parent=35 // pred_fallthru
          _
        // Predicated region
        $region57: #{tpu_custom_call.1} parent=35 // pred_check
          %p557 = pneg %p127
        $region58: #{tpu_custom_call.1} parent=35 // pred_check_branch
          %559 = sbr.rel (%p557) target = $region60
        $region59: #{tpu_custom_call.1} parent=35 // pred_region
          %s561 = ssub.s32 16, 16
          %562 = vsyncadd [#allocation6], %s561
          %s564 = sshll.u32 [#allocation10], 4
          %s565 = int_to_ptr.vmem [resolvable:$true] %s564
          %567 = dma.vmem_to_hbm [thread:$0]  %s565, 16, %s4, [#allocation6]
        $region60: #{tpu_custom_call.1} parent=35 // pred_fallthru
          _
        // Predicated region
        $region61: #{tpu_custom_call.1} parent=35 // pred_check
          %p568 = pneg %p127
        $region62: #{tpu_custom_call.1} parent=35 // pred_check_branch
          %570 = sbr.rel (%p568) target = $region64
        $region63: #{tpu_custom_call.1} parent=35 // pred_region
          %571 = dma.done [#allocation6], 16
        $region64: #{tpu_custom_call.1} parent=35 // pred_fallthru
          _
      $region36: #{tpu_custom_call.1} parent=5 // pred_fallthru
        _
      %p572 = scmp.le.s32.totalorder 2, %s15
      // Predicated region
      $region65: #{tpu_custom_call.1} parent=5 // pred_check
        %p573 = pneg %p572
      $region66: #{tpu_custom_call.1} parent=5 // pred_check_branch
        %575 = sbr.rel (%p573) target = $region68
      $region67: #{tpu_custom_call.1} parent=5 // pred_region
        %s576 = ssub.s32 %s15, 2
      $region68: #{tpu_custom_call.1} parent=5 // pred_fallthru
        _
    $region6: #{tpu_custom_call.1} parent=1 // loop_footer
      %s19 = sadd.s32 1, %s15
    $region7: #{tpu_custom_call.1} parent=1 // loop_footer_branch
      %14 = sbr.rel target = $region3
    $region8: #{tpu_custom_call.1} parent=1 // loop_exit
      _
    %577 = vsyncpa [#allocation5], 1
    %s578 = scalar_lea.sflag [#allocation5], 1
    %579 = vsyncpa %s578, 1
    %580 = vsyncpa [#allocation8], 1
    %s581 = scalar_lea.sflag [#allocation8], 1
    %582 = vsyncpa %s581, 1
    %583 = vsyncpa [#allocation6], 1
    %s584 = scalar_lea.sflag [#allocation6], 1
    %585 = vsyncpa %s584, 1

</llo_original>
